<compile_context>
chip_gen: v7x
topology: tpu7x:2x2x1
jax: 0.10.0
libtpu: 0.0.40
codegen_flags: <defaults>
</compile_context>

<pallas_src>
import functools

import jax
import jax.numpy as jnp
from jax.experimental import pallas as pl
from jax.experimental.pallas import tpu as pltpu


def _cls_head_kernel(x0_ref, w_ref, b_ref, o_ref):
    # x0_ref: (B, D), w_ref: (D, TO), b_ref: (1, TO), o_ref: (B, TO)
    acc = jnp.dot(x0_ref[...], w_ref[...], preferred_element_type=jnp.float32)
    acc = acc + b_ref[...].astype(jnp.float32)
    o_ref[...] = acc.astype(o_ref.dtype)


def _round_up(n, m):
    return ((n + m - 1) // m) * m


def _pick_o_tile(o_pad, max_tile=512):
    # o_pad is a multiple of 128; pick the largest 128-multiple tile <= max_tile
    # that divides o_pad exactly.
    t = min(o_pad, max_tile)
    while o_pad % t:
        t -= 128
    return t


def prepare_params(weight, bias):
    """One-time layout conversion (do NOT call per forward pass).

    weight: (O, D) torch-Linear layout -> (D, O_pad) lane-padded, pre-transposed.
    bias:   (O,)                       -> (1, O_pad) lane-padded.
    """
    O, D = weight.shape
    o_pad = _round_up(O, 128)
    w_t = jnp.zeros((D, o_pad), weight.dtype).at[:, :O].set(weight.T)
    b2 = jnp.zeros((1, o_pad), bias.dtype).at[:, :O].set(bias)
    return w_t, b2


@functools.partial(jax.jit, static_argnames=("output_dim",))
def classification_head(x, w_t, b2, *, output_dim):
    """x: (B, S, D); w_t: (D, O_pad) pre-transposed+padded; b2: (1, O_pad)."""
    B, S, D = x.shape
    o_pad = w_t.shape[1]
    to = _pick_o_tile(o_pad)
    grid_o = o_pad // to

    # Slice the CLS token before the kernel: only (B, D) gets DMA'd, not (B,S,D).
    x0 = x[:, 0, :]

    out_pad = pl.pallas_call(
        _cls_head_kernel,
        out_shape=jax.ShapeDtypeStruct((B, o_pad), x.dtype),
        grid_spec=pltpu.PrefetchScalarGridSpec(
            num_scalar_prefetch=0,
            grid=(grid_o,),
            in_specs=[
                pl.BlockSpec((B, D), lambda j: (0, 0)),     # CLS activations (resident)
                pl.BlockSpec((D, to), lambda j: (0, j)),    # weight tile
                pl.BlockSpec((1, to), lambda j: (0, j)),    # bias tile
            ],
            out_specs=pl.BlockSpec((B, to), lambda j: (0, j)),
        ),
        compiler_params=pltpu.CompilerParams(
            dimension_semantics=("parallel",)),
    )(x0, w_t, b2)

    # Drop the lane padding.
    return out_pad[:, :output_dim]


def classification_head_ref(x, weight, bias):
    """Plain-JAX reference matching the PyTorch forward."""
    return x[:, 0, :] @ weight.T + bias


def _run_case(key, B, S, D, O):
    k_x, k_w, k_b = jax.random.split(key, 3)
    x = jax.random.normal(k_x, (B, S, D), dtype=jnp.float32)
    # nn.init.normal_(weight, std=0.02); nn.init.normal_(bias, 0) -> mean 0, std 1.
    weight = 0.02 * jax.random.normal(k_w, (O, D), dtype=jnp.float32)
    bias = jax.random.normal(k_b, (O,), dtype=jnp.float32)

    # One-time param prep (transpose + lane padding hoisted out of the call path).
    w_t, b2 = prepare_params(weight, bias)

    out = classification_head(x, w_t, b2, output_dim=O)
    out = jax.block_until_ready(out)

    ref = classification_head_ref(x, weight, bias)
    assert out.shape == (B, O), out.shape
    assert jnp.allclose(out, ref, atol=1e-5, rtol=1e-5), (out, ref)


if __name__ == "__main__":
    key = jax.random.PRNGKey(0)
    k1, k2 = jax.random.split(key)

    # Small shapes: batch=2, seq=8, d_model=32, output_dim=5.
    _run_case(k1, B=2, S=8, D=32, O=5)
    # Module-default d_model=300 (non-multiple of 128 handled via full-dim blocks).
    _run_case(k2, B=2, S=8, D=300, O=5)

    print("KERNEL_OK")
</pallas_src>

<mosaic_0001>
module attributes {stable_mosaic.version = 11 : i64} {
  func.func @_cls_head_kernel(%arg0: i32, %arg1: memref<2x32xf32, #tpu.memory_space<vmem>>, %arg2: memref<32x128xf32, #tpu.memory_space<vmem>>, %arg3: memref<1x128xf32, #tpu.memory_space<vmem>>, %arg4: memref<2x128xf32, #tpu.memory_space<vmem>>) attributes {dimension_semantics = [#tpu.dimension_semantics<parallel>], iteration_bounds = array<i64: 1>, scalar_prefetch = 0 : i64, scratch_operands = 0 : i64, tpu.core_type = #tpu.core_type<tc>, window_params = [{pipeline_mode = #tpu.pipeline_mode<synchronous>, transform_indices = @transform_0, window_bounds = array<i64: 2, 32>}, {transform_indices = @transform_1, window_bounds = array<i64: 32, 128>}, {transform_indices = @transform_2, window_bounds = array<i64: 1, 128>}, {transform_indices = @transform_3, window_bounds = array<i64: 2, 128>}]} {
    %c0 = arith.constant 0 : index
    %c0_0 = arith.constant 0 : index
    %0 = vector.load %arg1[%c0, %c0_0] : memref<2x32xf32, #tpu.memory_space<vmem>>, vector<2x32xf32>
    %c0_1 = arith.constant 0 : index
    %c0_2 = arith.constant 0 : index
    %1 = vector.load %arg2[%c0_1, %c0_2] : memref<32x128xf32, #tpu.memory_space<vmem>>, vector<32x128xf32>
    %cst = arith.constant dense<0.000000e+00> : vector<2x128xf32>
    %2 = tpu.matmul %0, %1, %cst {dimension_numbers = #tpu.dot_dimension_numbers<[1], [0], [0], [1], [0, 0, 1, 1], [], []>} : vector<2x32xf32>, vector<32x128xf32>, vector<2x128xf32> -> vector<2x128xf32>
    %c0_3 = arith.constant 0 : index
    %c0_4 = arith.constant 0 : index
    %3 = vector.load %arg3[%c0_3, %c0_4] : memref<1x128xf32, #tpu.memory_space<vmem>>, vector<1x128xf32>
    %4 = vector.broadcast %3 : vector<1x128xf32> to vector<2x128xf32>
    %5 = arith.addf %2, %4 : vector<2x128xf32>
    %c0_5 = arith.constant 0 : index
    %c0_6 = arith.constant 0 : index
    %6 = vector.load %arg4[%c0_5, %c0_6] : memref<2x128xf32, #tpu.memory_space<vmem>>, vector<2x128xf32>
    tpu.vector_store %arg4[%c0_5, %c0_6], %5 {strides = array<i32>} : memref<2x128xf32, #tpu.memory_space<vmem>>, vector<2x128xf32>,
    return
  }
  func.func @transform_0(%arg0: i32) -> (i32, i32) {
    %c0_i32 = arith.constant 0 : i32
    %c0_i32_0 = arith.constant 0 : i32
    %c0_i32_1 = arith.constant 0 : i32
    return %c0_i32, %c0_i32_0 : i32, i32
  }
  func.func @transform_1(%arg0: i32) -> (i32, i32) {
    %c0_i32 = arith.constant 0 : i32
    %c0_i32_0 = arith.constant 0 : i32
    return %c0_i32, %arg0 : i32, i32
  }
  func.func @transform_2(%arg0: i32) -> (i32, i32) {
    %c0_i32 = arith.constant 0 : i32
    %c0_i32_0 = arith.constant 0 : i32
    return %c0_i32, %arg0 : i32, i32
  }
  func.func @transform_3(%arg0: i32) -> (i32, i32) {
    %c0_i32 = arith.constant 0 : i32
    %c0_i32_0 = arith.constant 0 : i32
    return %c0_i32, %arg0 : i32, i32
  }
}

</mosaic_0001>

<llo_original>
// kernel: classification_head.1
$region0: #{classification_head.1}
  #allocation0 [shape = 'u32[]', space=smem, size = 0x4, offset = 0x4, fixed_abs, tag = 'smem constant byte address 0x4 - core index']
  #allocation1 [shape = 'u32[144,128]{1,0:T(1,128)}', space=vmem, size = 0x12000, scoped, tag = 'internal scratch']
  %s0 = inlined_call_operand.vmem [shape: f32[2,32], index: 0, kind: input, shape index: {}]
  %s1 = inlined_call_operand.hbm [shape: f32[32,128], index: 1, kind: input, shape index: {}]
  %s2 = inlined_call_operand.vmem [shape: f32[1,128], index: 2, kind: input, shape index: {}]
  %s3 = inlined_call_operand.hbm [shape: f32[2,128], index: 3, kind: output, shape index: {}]
  %s4 = sld [smem:[#allocation0]]
  $region26: #{classification_head.1} parent=0
    _
  %s6 = ssub.s32 1, %s4
  %s7 = scalar_select 0, %s6, %s4
  $region1: #{classification_head.1} parent=0
    #allocation2 [shape = 'u8[16384]{0}', space=vmem, size = 0x4000, scoped, tag = 'input window, operand 1, single buffered']
    #allocation3 [shape = 's32[1]{0}', space=sflag, size = 0x4, scoped, tag = 'scoped memory for classification_head.1']
    #allocation4 [shape = 's32[1]{0}', space=sflag, size = 0x4, scoped, tag = 'scoped memory for classification_head.1']
    #allocation5 [shape = 'u8[1024]{0}', space=vmem, size = 0x400, scoped, tag = 'output window, operand 0, single buffered']
    %8 = vsyncpa [#allocation3], 0
    %9 = vsyncpa [#allocation4], 0
    // Predicated region
    $region2: #{classification_head.1} parent=1 // pred_check
      _
    $region3: #{classification_head.1} parent=1 // pred_check_branch
      %11 = sbr.rel (0) target = $region5
    $region4: #{classification_head.1} parent=1 // pred_region
      _
    $region5: #{classification_head.1} parent=1 // pred_fallthru
      _
    // Predicated region
    $region6: #{classification_head.1} parent=1 // pred_check
      _
    $region7: #{classification_head.1} parent=1 // pred_check_branch
      %13 = sbr.rel (0) target = $region9
    $region8: #{classification_head.1} parent=1 // pred_region
      %s15 = ssub.s32 512, 512
      %16 = vsyncadd [#allocation3], %s15
      %s17 = sshll.u32 [#allocation2], 4
      %s18 = int_to_ptr.vmem [resolvable:$true] %s17
      %23 = dma.hbm_to_vmem [thread:$0]  %s1, 512, %s18, [#allocation3], 128, 128, 8
    $region9: #{classification_head.1} parent=1 // pred_fallthru
      _
    // Predicated region
    $region10: #{classification_head.1} parent=1 // pred_check
      _
    $region11: #{classification_head.1} parent=1 // pred_check_branch
      %25 = sbr.rel (0) target = $region13
    $region12: #{classification_head.1} parent=1 // pred_region
      _
    $region13: #{classification_head.1} parent=1 // pred_fallthru
      _
    // Predicated region
    $region14: #{classification_head.1} parent=1 // pred_check
      _
    $region15: #{classification_head.1} parent=1 // pred_check_branch
      %27 = sbr.rel (0) target = $region17
    $region16: #{classification_head.1} parent=1 // pred_region
      %28 = dma.done [#allocation3], 512
    $region17: #{classification_head.1} parent=1 // pred_fallthru
      _
    %v29 = vld [vmem:[%s0] sm:$0x3]
    %v30 = vld [vmem:[#allocation2] sm:$0xff]
    %v31 = vld [vmem:[#allocation2 + $0x8] sm:$0xff]
    %v32 = vld [vmem:[#allocation2 + $0x10] sm:$0xff]
    %v33 = vld [vmem:[#allocation2 + $0x18] sm:$0xff]
    %v34 = vld [vmem:[%s2] sm:$0x1]
    %v36 = vlaneseq
    %v37 = vshrl.u32 %v36, 7
    %v38 = vsub.s32 0, %v37
    %v39 = vrot.slane %v34, %v38
    %vm41 = vcmask 261120
    %v43 = vsel %vm41, %v29, 0
    %45 = vmatprep.subr.mxu0 0.0
    %46 = vmatpush1.msra.mxu0 %v30
    %47 = vmatprep.subr.mxu0 0.0
    %48 = vmatpush1.msra.mxu0 %v31
    %49 = vmatprep.subr.mxu0 0.0
    %50 = vmatpush1.msra.mxu0 %v32
    %51 = vmatprep.subr.mxu0 0.0
    %52 = vmatpush1.msra.mxu0 %v33
    %53 = vmatprep.subr.mxu0 0.0
    %54 = vmatpush1.msra.mxu0 0.0
    %55 = vmatprep.subr.mxu0 0.0
    %56 = vmatpush1.msra.mxu0 0.0
    %57 = vmatprep.subr.mxu0 0.0
    %58 = vmatpush1.msra.mxu0 0.0
    %59 = vmatprep.subr.mxu0 0.0
    %60 = vmatpush1.msra.mxu0 0.0
    %61 = vmatprep.subr.mxu0 0.0
    %62 = vmatpush1.msra.mxu0 0.0
    %63 = vmatprep.subr.mxu0 0.0
    %64 = vmatpush1.msra.mxu0 0.0
    %65 = vmatprep.subr.mxu0 0.0
    %66 = vmatpush1.msra.mxu0 0.0
    %67 = vmatprep.subr.mxu0 0.0
    %68 = vmatpush1.msra.mxu0 0.0
    %69 = vmatprep.subr.mxu0 0.0
    %70 = vmatpush1.msra.mxu0 0.0
    %71 = vmatprep.subr.mxu0 0.0
    %72 = vmatpush1.msra.mxu0 0.0
    %73 = vmatprep.subr.mxu0 0.0
    %74 = vmatpush1.msra.mxu0 0.0
    %75 = vmatprep.subr.mxu0 0.0
    %76 = vmatpush1.msra.mxu0 0.0
    %77 = vmatprep.subr.mxu0 0.0
    %78 = vmatpush1.msra.mxu0 0.0
    %79 = vmatprep.subr.mxu0 0.0
    %80 = vmatpush1.msra.mxu0 0.0
    %81 = vmatprep.subr.mxu0 0.0
    %82 = vmatpush1.msra.mxu0 0.0
    %83 = vmatprep.subr.mxu0 0.0
    %84 = vmatpush1.msra.mxu0 0.0
    %85 = vmatprep.subr.mxu0 0.0
    %86 = vmatpush1.msra.mxu0 0.0
    %87 = vmatprep.subr.mxu0 0.0
    %88 = vmatpush1.msra.mxu0 0.0
    %89 = vmatprep.subr.mxu0 0.0
    %90 = vmatpush1.msra.mxu0 0.0
    %91 = vmatprep.subr.mxu0 0.0
    %92 = vmatpush1.msra.mxu0 0.0
    %93 = vmatprep.subr.mxu0 0.0
    %94 = vmatpush1.msra.mxu0 0.0
    %95 = vmatprep.subr.mxu0 0.0
    %96 = vmatpush1.msra.mxu0 0.0
    %97 = vmatprep.subr.mxu0 0.0
    %98 = vmatpush1.msra.mxu0 0.0
    %99 = vmatprep.subr.mxu0 0.0
    %100 = vmatpush1.msra.mxu0 0.0
    %101 = vmatprep.subr.mxu0 0.0
    %102 = vmatpush1.msra.mxu0 0.0
    %103 = vmatprep.subr.mxu0 0.0
    %104 = vmatpush1.msra.mxu0 0.0
    %105 = vmatprep.subr.mxu0 0.0
    %106 = vmatpush1.msra.mxu0 0.0
    %107 = vmatprep.subr.mxu0 0.0
    %108 = vmatpush1.msra.mxu0 0.0
    %109 = vmatprep.mubr.f32.mxu0 0.0
    %110 = vmatmul.mubr.f32.gmra.mrb[0].mxu0 %v43
    %v111 = vpop.f32.mrb[0].mxu0
    %v112 = vadd.f32 %v39, %v111
    %v113 = vpop.f32.mrb[0].mxu0
    %114 = vdwg.mxu0
    %115 = vst [vmem:[#allocation5] sm:$0x3] %v112
    // Predicated region
    $region18: #{classification_head.1} parent=1 // pred_check
      _
    $region19: #{classification_head.1} parent=1 // pred_check_branch
      %117 = sbr.rel (0) target = $region21
    $region20: #{classification_head.1} parent=1 // pred_region
      %s119 = ssub.s32 32, 32
      %120 = vsyncadd [#allocation4], %s119
      %s122 = sshll.u32 [#allocation5], 4
      %s123 = int_to_ptr.vmem [resolvable:$true] %s122
      %125 = dma.vmem_to_hbm [thread:$0]  %s123, 32, %s3, [#allocation4]
    $region21: #{classification_head.1} parent=1 // pred_fallthru
      _
    // Predicated region
    $region22: #{classification_head.1} parent=1 // pred_check
      _
    $region23: #{classification_head.1} parent=1 // pred_check_branch
      %127 = sbr.rel (0) target = $region25
    $region24: #{classification_head.1} parent=1 // pred_region
      %128 = dma.done [#allocation4], 32
    $region25: #{classification_head.1} parent=1 // pred_fallthru
      _
    %129 = vsyncpa [#allocation3], 1
    %130 = vsyncpa [#allocation4], 1

</llo_original>
